<compile_context>
chip_gen: v6e
topology: v6e:2x2x1
jax: 0.10.0
libtpu: 0.0.40
codegen_flags: <defaults>
</compile_context>

<pallas_src>
import functools

import jax
import jax.numpy as jnp
from jax import lax
from jax.experimental import pallas as pl
from jax.experimental.pallas import tpu as pltpu

LANE = 128
SUB = 8                  # sublanes per f32 vreg
MAX_TILE_ROWS = 4096     # (4096, 128) f32 block = 2 MiB; 8 MiB double-buffered inputs
NUM_SPLITS = 2           # outer "parallel" axis -> both TCs on v7x
VMEM_LIMIT_BYTES = 64 * 1024 * 1024


def _round_up(x, m):
    return (x + m - 1) // m * m


def _dropoutput_partial_kernel(yt_ref, yp_ref, out_ref, *, alpha, smooth,
                               n_valid, tile_rows, tiles_per_split):
    """Accumulate four partial sums for one (tile_rows, 128) tile.

    out_ref block (1, 4, SUB, LANE), resident across the reduction axis:
      [0,0] : sum  w * y_true       * log(y_pred + smooth)
      [0,1] : sum  w * y_true
      [0,2] : sum  w * (1 - y_true) * log(1 - y_pred + smooth)
      [0,3] : sum  w * (1 - y_true)
    """
    c = pl.program_id(0)
    i = pl.program_id(1)

    @pl.when(i == 0)
    def _init():
        out_ref[...] = jnp.zeros_like(out_ref)

    yt = yt_ref[...].astype(jnp.float32)
    yp = yp_ref[...].astype(jnp.float32)

    # First / one-past-last flattened element index nominally covered by this
    # tile (int32 math: fine for n < 2**31 elements).
    tile_elems = tile_rows * LANE
    tile_start = (c * tiles_per_split + i) * tile_elems
    tile_end = tile_start + tile_elems

    def _fold(x):
        # (tile_rows, LANE) -> (SUB, LANE): sum over whole sublane groups;
        # a chain of elementwise vreg adds on the VALU (no XLU reduce).
        return x.reshape(tile_rows // SUB, SUB, LANE).sum(axis=0)

    def _accumulate(yt_v, yp_v, w_scale=None):
        # w = round(|y_true - y_pred| + alpha)  (round-half-to-even, as torch)
        w = jnp.round(jnp.abs(yt_v - yp_v) + jnp.float32(alpha))
        if w_scale is not None:
            w = w * w_scale                       # zero out invalid elements
        a = w * yt_v                              # w * y_true
        b = w - a                                 # w * (1 - y_true)
        log_p = jnp.log(yp_v + jnp.float32(smooth))
        log_q = jnp.log(jnp.float32(1.0 + smooth) - yp_v)
        out_ref[0, 0] += _fold(a * log_p)
        out_ref[0, 1] += _fold(a)
        out_ref[0, 2] += _fold(b * log_q)
        out_ref[0, 3] += _fold(b)

    @pl.when(tile_end <= n_valid)
    def _full_tile():
        _accumulate(yt, yp)

    @pl.when(tile_end > n_valid)
    def _ragged_tile():
        # Tile extends past the real data (partial / out-of-bounds rows hold
        # unspecified values).  Build an element-validity mask and sanitize the
        # inputs so every log stays finite; then force w -> 0 on invalid
        # elements so all four partial sums are untouched by garbage.
        rows_iota = lax.broadcasted_iota(jnp.int32, (tile_rows, LANE), 0)
        lane_iota = lax.broadcasted_iota(jnp.int32, (tile_rows, LANE), 1)
        rem = n_valid - tile_start                # may be <= 0 (fully OOB tile)
        valid = (rows_iota * LANE + lane_iota) < rem
        yt_m = jnp.where(valid, yt, jnp.float32(0.0))
        yp_m = jnp.where(valid, yp, jnp.float32(0.5))   # keeps both logs finite
        _accumulate(yt_m, yp_m, w_scale=valid.astype(jnp.float32))


def _prep(x):
    if x.dtype == jnp.float32 or x.dtype == jnp.bfloat16:
        return x
    return x.astype(jnp.float32)


def dropoutput_loss(y_true, y_pred, alpha=0.4):
    smooth = 1e-06
    yt = _prep(y_true).reshape(-1)
    yp = _prep(y_pred).reshape(-1)
    n = yt.shape[0]

    both_bf16 = (yt.dtype == jnp.bfloat16) and (yp.dtype == jnp.bfloat16)
    sub_align = 16 if both_bf16 else SUB          # bf16 packs (16,128) per vreg
    max_tile_rows = MAX_TILE_ROWS * (2 if both_bf16 else 1)

    rows = pl.cdiv(n, LANE)
    rows_arr = max(rows, sub_align)
    n_arr = rows_arr * LANE
    pad = n_arr - n
    if pad:
        # TODO(synk): unavoidable copy only when n % 128 != 0 (or n < one
        # sublane tile); pad values are excluded by the in-kernel mask.
        yt = jnp.pad(yt, (0, pad))
        yp = jnp.pad(yp, (0, pad))
    yt2 = yt.reshape(rows_arr, LANE)
    yp2 = yp.reshape(rows_arr, LANE)

    # --- tile / split selection (decoupled from any data padding) -----------
    num_splits = NUM_SPLITS if rows_arr >= 2 * sub_align else 1
    tiles_per_split = pl.cdiv(rows_arr, num_splits * max_tile_rows)
    tile_rows = _round_up(pl.cdiv(rows_arr, num_splits * tiles_per_split),
                          sub_align)
    tile_rows = min(tile_rows, rows_arr // sub_align * sub_align)
    tiles_per_split = pl.cdiv(pl.cdiv(rows_arr, tile_rows), num_splits)
    # Never generate a trailing tile that is fully out of bounds.
    if (num_splits * tiles_per_split - 1) * tile_rows >= rows_arr:
        num_splits = 1
        tiles_per_split = pl.cdiv(rows_arr, tile_rows)

    kernel = functools.partial(
        _dropoutput_partial_kernel, alpha=float(alpha), smooth=float(smooth),
        n_valid=n, tile_rows=tile_rows, tiles_per_split=tiles_per_split)

    in_idx = lambda c, i: (c * tiles_per_split + i, 0)
    partials = pl.pallas_call(
        kernel,
        out_shape=jax.ShapeDtypeStruct((num_splits, 4, SUB, LANE), jnp.float32),
        grid_spec=pltpu.PrefetchScalarGridSpec(
            num_scalar_prefetch=0,
            grid=(num_splits, tiles_per_split),
            in_specs=[
                pl.BlockSpec((tile_rows, LANE), in_idx),
                pl.BlockSpec((tile_rows, LANE), in_idx),
            ],
            out_specs=pl.BlockSpec((1, 4, SUB, LANE),
                                   lambda c, i: (c, 0, 0, 0)),
        ),
        compiler_params=pltpu.CompilerParams(
            dimension_semantics=("parallel", "arbitrary"),
            vmem_limit_bytes=VMEM_LIMIT_BYTES),
    )(yt2, yp2)

    sums = jnp.sum(partials, axis=(0, 2, 3))            # (4,)
    s_a_log, s_a, s_b_log, s_b = sums[0], sums[1], sums[2], sums[3]

    # torch.sum(x + smooth) over the n real elements == sum(x) + n * smooth
    extra = jnp.float32(n) * jnp.float32(smooth)
    loss = -(s_a_log / (s_a + extra) + s_b_log / (s_b + extra)) * jnp.float32(0.5)
    return loss


def dropoutput_loss_ref(y_true, y_pred, alpha=0.4):
    """Pure-JAX reference mirroring the PyTorch forward exactly."""
    smooth = 1e-06
    y_true = y_true.astype(jnp.float32)
    y_pred = y_pred.astype(jnp.float32)
    w = jnp.round(jnp.abs(y_true - y_pred) + alpha)
    loss_ce = -(
        jnp.sum(w * y_true * jnp.log(y_pred + smooth))
        / jnp.sum(w * y_true + smooth)
        + jnp.sum(w * (1 - y_true) * jnp.log(1 - y_pred + smooth))
        / jnp.sum(w * (1 - y_true) + smooth)
    ) / 2
    return loss_ce


def _check(shape, key, rtol, atol):
    k1, k2 = jax.random.split(key)
    y_pred = jax.random.uniform(k1, shape, dtype=jnp.float32,
                                minval=0.01, maxval=0.99)
    y_true = (jax.random.uniform(k2, shape, dtype=jnp.float32) > 0.5).astype(
        jnp.float32)
    loss = jax.block_until_ready(dropoutput_loss(y_true, y_pred, alpha=0.4))
    ref = dropoutput_loss_ref(y_true, y_pred, alpha=0.4)
    assert jnp.allclose(loss, ref, rtol=rtol, atol=atol), (shape, loss, ref)


if __name__ == "__main__":
    key = jax.random.PRNGKey(0)
    k_a, k_b, k_c, k_d = jax.random.split(key, 4)

    # Primary small NCHW-like shape: batch=2, channels=4, spatial=16x16
    # (pad-free, no ragged tile, 2-way split path).
    _check((2, 4, 16, 16), k_a, rtol=5e-5, atol=1e-6)

    # n % 128 != 0: exercises the tiny lane pad + in-kernel element mask.
    _check((2, 4, 15, 15), k_b, rtol=5e-5, atol=1e-6)

    # Unaligned mid-size shape: pad-free, ragged last tile handled in-kernel.
    _check((2, 4, 200, 200), k_c, rtol=2e-4, atol=1e-5)

    # Larger shape hitting the full 4096-row tiles and multi-step accumulation.
    _check((4, 4, 256, 512), k_d, rtol=5e-4, atol=1e-4)

    print("KERNEL_OK")
</pallas_src>

<mosaic_0001>
module attributes {stable_mosaic.version = 11 : i64} {
  func.func @_dropoutput_partial_kernel(%arg0: i32, %arg1: i32, %arg2: memref<8x128xf32, #tpu.memory_space<vmem>>, %arg3: memref<8x128xf32, #tpu.memory_space<vmem>>, %arg4: memref<1x4x8x128xf32, #tpu.memory_space<vmem>>) attributes {dimension_semantics = [#tpu.dimension_semantics<parallel>, #tpu.dimension_semantics<arbitrary>], iteration_bounds = array<i64: 2, 1>, scalar_prefetch = 0 : i64, scratch_operands = 0 : i64, tpu.core_type = #tpu.core_type<tc>, window_params = [{transform_indices = @transform_0, window_bounds = array<i64: 8, 128>}, {transform_indices = @transform_1, window_bounds = array<i64: 8, 128>}, {transform_indices = @transform_2, window_bounds = array<i64: 1, 4, 8, 128>}]} {
    %c0_i32 = arith.constant 0 : i32
    %0 = arith.cmpi eq, %arg1, %c0_i32 : i32
    %1 = arith.extui %0 : i1 to i32
    %c0_i32_0 = arith.constant 0 : i32
    %2 = arith.cmpi ne, %1, %c0_i32_0 : i32
    scf.if %2 {
      %cst = arith.constant 0.000000e+00 : f32
      %15 = vector.broadcast %cst : f32 to vector<1x4x8x128xf32>
      %c0_8 = arith.constant 0 : index
      %c0_9 = arith.constant 0 : index
      %c0_10 = arith.constant 0 : index
      %c0_11 = arith.constant 0 : index
      %16 = vector.load %arg4[%c0_8, %c0_9, %c0_10, %c0_11] : memref<1x4x8x128xf32, #tpu.memory_space<vmem>>, vector<1x4x8x128xf32>
      tpu.vector_store %arg4[%c0_8, %c0_9, %c0_10, %c0_11], %15 {strides = array<i32>} : memref<1x4x8x128xf32, #tpu.memory_space<vmem>>, vector<1x4x8x128xf32>,
    } else {
    }
    %c0 = arith.constant 0 : index
    %c0_1 = arith.constant 0 : index
    %3 = vector.load %arg2[%c0, %c0_1] : memref<8x128xf32, #tpu.memory_space<vmem>>, vector<8x128xf32>
    %c0_2 = arith.constant 0 : index
    %c0_3 = arith.constant 0 : index
    %4 = vector.load %arg3[%c0_2, %c0_3] : memref<8x128xf32, #tpu.memory_space<vmem>>, vector<8x128xf32>
    %c1_i32 = arith.constant 1 : i32
    %5 = arith.muli %arg0, %c1_i32 : i32
    %6 = arith.addi %5, %arg1 : i32
    %c1024_i32 = arith.constant 1024 : i32
    %7 = arith.muli %6, %c1024_i32 : i32
    %c1024_i32_4 = arith.constant 1024 : i32
    %8 = arith.addi %7, %c1024_i32_4 : i32
    %c2048_i32 = arith.constant 2048 : i32
    %9 = arith.cmpi sle, %8, %c2048_i32 : i32
    %10 = arith.extui %9 : i1 to i32
    %c0_i32_5 = arith.constant 0 : i32
    %11 = arith.cmpi ne, %10, %c0_i32_5 : i32
    scf.if %11 {
      %15 = arith.subf %3, %4 : vector<8x128xf32>
      %16 = math.absf %15 : vector<8x128xf32>
      %cst = arith.constant 4.000000e-01 : f32
      %17 = vector.broadcast %cst : f32 to vector<8x128xf32>
      %18 = arith.addf %16, %17 : vector<8x128xf32>
      %19 = math.roundeven %18 : vector<8x128xf32>
      %20 = arith.mulf %19, %3 : vector<8x128xf32>
      %21 = arith.subf %19, %20 : vector<8x128xf32>
      %cst_8 = arith.constant 9.99999997E-7 : f32
      %22 = vector.broadcast %cst_8 : f32 to vector<8x128xf32>
      %23 = arith.addf %4, %22 : vector<8x128xf32>
      %24 = math.log %23 : vector<8x128xf32>
      %cst_9 = arith.constant 1.00000095 : f32
      %25 = vector.broadcast %cst_9 : f32 to vector<8x128xf32>
      %26 = arith.subf %25, %4 : vector<8x128xf32>
      %27 = math.log %26 : vector<8x128xf32>
      %c0_10 = arith.constant 0 : index
      %c0_11 = arith.constant 0 : index
      %c0_12 = arith.constant 0 : index
      %c0_13 = arith.constant 0 : index
      %28 = vector.load %arg4[%c0_10, %c0_11, %c0_12, %c0_13] : memref<1x4x8x128xf32, #tpu.memory_space<vmem>>, vector<1x1x8x128xf32>
      %29 = vector.shape_cast %28 : vector<1x1x8x128xf32> to vector<8x128xf32>
      %30 = arith.mulf %20, %24 : vector<8x128xf32>
      %31 = vector.shape_cast %30 : vector<8x128xf32> to vector<1x8x128xf32>
      %cst_14 = arith.constant dense<0.000000e+00> : vector<8x128xf32>
      %32 = vector.multi_reduction <add>, %31, %cst_14 [0] : vector<1x8x128xf32> to vector<8x128xf32>
      %33 = arith.addf %29, %32 : vector<8x128xf32>
      %c0_15 = arith.constant 0 : index
      %c0_16 = arith.constant 0 : index
      %c0_17 = arith.constant 0 : index
      %c0_18 = arith.constant 0 : index
      %34 = vector.load %arg4[%c0_15, %c0_16, %c0_17, %c0_18] : memref<1x4x8x128xf32, #tpu.memory_space<vmem>>, vector<1x1x8x128xf32>
      %35 = vector.shape_cast %34 : vector<1x1x8x128xf32> to vector<8x128xf32>
      %36 = vector.shape_cast %33 : vector<8x128xf32> to vector<1x1x8x128xf32>
      tpu.vector_store %arg4[%c0_15, %c0_16, %c0_17, %c0_18], %36 {strides = array<i32>} : memref<1x4x8x128xf32, #tpu.memory_space<vmem>>, vector<1x1x8x128xf32>,
      %c0_19 = arith.constant 0 : index
      %c1 = arith.constant 1 : index
      %c0_20 = arith.constant 0 : index
      %c0_21 = arith.constant 0 : index
      %37 = vector.load %arg4[%c0_19, %c1, %c0_20, %c0_21] : memref<1x4x8x128xf32, #tpu.memory_space<vmem>>, vector<1x1x8x128xf32>
      %38 = vector.shape_cast %37 : vector<1x1x8x128xf32> to vector<8x128xf32>
      %39 = vector.shape_cast %20 : vector<8x128xf32> to vector<1x8x128xf32>
      %cst_22 = arith.constant dense<0.000000e+00> : vector<8x128xf32>
      %40 = vector.multi_reduction <add>, %39, %cst_22 [0] : vector<1x8x128xf32> to vector<8x128xf32>
      %41 = arith.addf %38, %40 : vector<8x128xf32>
      %c0_23 = arith.constant 0 : index
      %c1_24 = arith.constant 1 : index
      %c0_25 = arith.constant 0 : index
      %c0_26 = arith.constant 0 : index
      %42 = vector.load %arg4[%c0_23, %c1_24, %c0_25, %c0_26] : memref<1x4x8x128xf32, #tpu.memory_space<vmem>>, vector<1x1x8x128xf32>
      %43 = vector.shape_cast %42 : vector<1x1x8x128xf32> to vector<8x128xf32>
      %44 = vector.shape_cast %41 : vector<8x128xf32> to vector<1x1x8x128xf32>
      tpu.vector_store %arg4[%c0_23, %c1_24, %c0_25, %c0_26], %44 {strides = array<i32>} : memref<1x4x8x128xf32, #tpu.memory_space<vmem>>, vector<1x1x8x128xf32>,
      %c0_27 = arith.constant 0 : index
      %c2 = arith.constant 2 : index
      %c0_28 = arith.constant 0 : index
      %c0_29 = arith.constant 0 : index
      %45 = vector.load %arg4[%c0_27, %c2, %c0_28, %c0_29] : memref<1x4x8x128xf32, #tpu.memory_space<vmem>>, vector<1x1x8x128xf32>
      %46 = vector.shape_cast %45 : vector<1x1x8x128xf32> to vector<8x128xf32>
      %47 = arith.mulf %21, %27 : vector<8x128xf32>
      %48 = vector.shape_cast %47 : vector<8x128xf32> to vector<1x8x128xf32>
      %cst_30 = arith.constant dense<0.000000e+00> : vector<8x128xf32>
      %49 = vector.multi_reduction <add>, %48, %cst_30 [0] : vector<1x8x128xf32> to vector<8x128xf32>
      %50 = arith.addf %46, %49 : vector<8x128xf32>
      %c0_31 = arith.constant 0 : index
      %c2_32 = arith.constant 2 : index
      %c0_33 = arith.constant 0 : index
      %c0_34 = arith.constant 0 : index
      %51 = vector.load %arg4[%c0_31, %c2_32, %c0_33, %c0_34] : memref<1x4x8x128xf32, #tpu.memory_space<vmem>>, vector<1x1x8x128xf32>
      %52 = vector.shape_cast %51 : vector<1x1x8x128xf32> to vector<8x128xf32>
      %53 = vector.shape_cast %50 : vector<8x128xf32> to vector<1x1x8x128xf32>
      tpu.vector_store %arg4[%c0_31, %c2_32, %c0_33, %c0_34], %53 {strides = array<i32>} : memref<1x4x8x128xf32, #tpu.memory_space<vmem>>, vector<1x1x8x128xf32>,
      %c0_35 = arith.constant 0 : index
      %c3 = arith.constant 3 : index
      %c0_36 = arith.constant 0 : index
      %c0_37 = arith.constant 0 : index
      %54 = vector.load %arg4[%c0_35, %c3, %c0_36, %c0_37] : memref<1x4x8x128xf32, #tpu.memory_space<vmem>>, vector<1x1x8x128xf32>
      %55 = vector.shape_cast %54 : vector<1x1x8x128xf32> to vector<8x128xf32>
      %56 = vector.shape_cast %21 : vector<8x128xf32> to vector<1x8x128xf32>
      %cst_38 = arith.constant dense<0.000000e+00> : vector<8x128xf32>
      %57 = vector.multi_reduction <add>, %56, %cst_38 [0] : vector<1x8x128xf32> to vector<8x128xf32>
      %58 = arith.addf %55, %57 : vector<8x128xf32>
      %c0_39 = arith.constant 0 : index
      %c3_40 = arith.constant 3 : index
      %c0_41 = arith.constant 0 : index
      %c0_42 = arith.constant 0 : index
      %59 = vector.load %arg4[%c0_39, %c3_40, %c0_41, %c0_42] : memref<1x4x8x128xf32, #tpu.memory_space<vmem>>, vector<1x1x8x128xf32>
      %60 = vector.shape_cast %59 : vector<1x1x8x128xf32> to vector<8x128xf32>
      %61 = vector.shape_cast %58 : vector<8x128xf32> to vector<1x1x8x128xf32>
      tpu.vector_store %arg4[%c0_39, %c3_40, %c0_41, %c0_42], %61 {strides = array<i32>} : memref<1x4x8x128xf32, #tpu.memory_space<vmem>>, vector<1x1x8x128xf32>,
    } else {
    }
    %c2048_i32_6 = arith.constant 2048 : i32
    %12 = arith.cmpi sgt, %8, %c2048_i32_6 : i32
    %13 = arith.extui %12 : i1 to i32
    %c0_i32_7 = arith.constant 0 : i32
    %14 = arith.cmpi ne, %13, %c0_i32_7 : i32
    scf.if %14 {
      %15 = tpu.iota {dimensions = array<i32: 0>} : vector<8x128xi32>
      %16 = tpu.iota {dimensions = array<i32: 1>} : vector<8x128xi32>
      %c2048_i32_8 = arith.constant 2048 : i32
      %17 = arith.subi %c2048_i32_8, %7 : i32
      %c128_i32 = arith.constant 128 : i32
      %18 = vector.broadcast %c128_i32 : i32 to vector<8x128xi32>
      %19 = arith.muli %15, %18 : vector<8x128xi32>
      %20 = arith.addi %19, %16 : vector<8x128xi32>
      %21 = vector.broadcast %17 : i32 to vector<8x128xi32>
      %22 = arith.cmpi slt, %20, %21 : vector<8x128xi32>
      %cst = arith.constant 0.000000e+00 : f32
      %23 = vector.broadcast %cst : f32 to vector<8x128xf32>
      %24 = arith.select %22, %3, %23 : vector<8x128xi1>, vector<8x128xf32>
      %cst_9 = arith.constant 5.000000e-01 : f32
      %25 = vector.broadcast %cst_9 : f32 to vector<8x128xf32>
      %26 = arith.select %22, %4, %25 : vector<8x128xi1>, vector<8x128xf32>
      %27 = arith.extui %22 : vector<8x128xi1> to vector<8x128xi32>
      %28 = arith.sitofp %27 : vector<8x128xi32> to vector<8x128xf32>
      %29 = arith.subf %24, %26 : vector<8x128xf32>
      %30 = math.absf %29 : vector<8x128xf32>
      %cst_10 = arith.constant 4.000000e-01 : f32
      %31 = vector.broadcast %cst_10 : f32 to vector<8x128xf32>
      %32 = arith.addf %30, %31 : vector<8x128xf32>
      %33 = math.roundeven %32 : vector<8x128xf32>
      %34 = arith.mulf %33, %28 : vector<8x128xf32>
      %35 = arith.mulf %34, %24 : vector<8x128xf32>
      %36 = arith.subf %34, %35 : vector<8x128xf32>
      %cst_11 = arith.constant 9.99999997E-7 : f32
      %37 = vector.broadcast %cst_11 : f32 to vector<8x128xf32>
      %38 = arith.addf %26, %37 : vector<8x128xf32>
      %39 = math.log %38 : vector<8x128xf32>
      %cst_12 = arith.constant 1.00000095 : f32
      %40 = vector.broadcast %cst_12 : f32 to vector<8x128xf32>
      %41 = arith.subf %40, %26 : vector<8x128xf32>
      %42 = math.log %41 : vector<8x128xf32>
      %c0_13 = arith.constant 0 : index
      %c0_14 = arith.constant 0 : index
      %c0_15 = arith.constant 0 : index
      %c0_16 = arith.constant 0 : index
      %43 = vector.load %arg4[%c0_13, %c0_14, %c0_15, %c0_16] : memref<1x4x8x128xf32, #tpu.memory_space<vmem>>, vector<1x1x8x128xf32>
      %44 = vector.shape_cast %43 : vector<1x1x8x128xf32> to vector<8x128xf32>
      %45 = arith.mulf %35, %39 : vector<8x128xf32>
      %46 = vector.shape_cast %45 : vector<8x128xf32> to vector<1x8x128xf32>
      %cst_17 = arith.constant dense<0.000000e+00> : vector<8x128xf32>
      %47 = vector.multi_reduction <add>, %46, %cst_17 [0] : vector<1x8x128xf32> to vector<8x128xf32>
      %48 = arith.addf %44, %47 : vector<8x128xf32>
      %c0_18 = arith.constant 0 : index
      %c0_19 = arith.constant 0 : index
      %c0_20 = arith.constant 0 : index
      %c0_21 = arith.constant 0 : index
      %49 = vector.load %arg4[%c0_18, %c0_19, %c0_20, %c0_21] : memref<1x4x8x128xf32, #tpu.memory_space<vmem>>, vector<1x1x8x128xf32>
      %50 = vector.shape_cast %49 : vector<1x1x8x128xf32> to vector<8x128xf32>
      %51 = vector.shape_cast %48 : vector<8x128xf32> to vector<1x1x8x128xf32>
      tpu.vector_store %arg4[%c0_18, %c0_19, %c0_20, %c0_21], %51 {strides = array<i32>} : memref<1x4x8x128xf32, #tpu.memory_space<vmem>>, vector<1x1x8x128xf32>,
      %c0_22 = arith.constant 0 : index
      %c1 = arith.constant 1 : index
      %c0_23 = arith.constant 0 : index
      %c0_24 = arith.constant 0 : index
      %52 = vector.load %arg4[%c0_22, %c1, %c0_23, %c0_24] : memref<1x4x8x128xf32, #tpu.memory_space<vmem>>, vector<1x1x8x128xf32>
      %53 = vector.shape_cast %52 : vector<1x1x8x128xf32> to vector<8x128xf32>
      %54 = vector.shape_cast %35 : vector<8x128xf32> to vector<1x8x128xf32>
      %cst_25 = arith.constant dense<0.000000e+00> : vector<8x128xf32>
      %55 = vector.multi_reduction <add>, %54, %cst_25 [0] : vector<1x8x128xf32> to vector<8x128xf32>
      %56 = arith.addf %53, %55 : vector<8x128xf32>
      %c0_26 = arith.constant 0 : index
      %c1_27 = arith.constant 1 : index
      %c0_28 = arith.constant 0 : index
      %c0_29 = arith.constant 0 : index
      %57 = vector.load %arg4[%c0_26, %c1_27, %c0_28, %c0_29] : memref<1x4x8x128xf32, #tpu.memory_space<vmem>>, vector<1x1x8x128xf32>
      %58 = vector.shape_cast %57 : vector<1x1x8x128xf32> to vector<8x128xf32>
      %59 = vector.shape_cast %56 : vector<8x128xf32> to vector<1x1x8x128xf32>
      tpu.vector_store %arg4[%c0_26, %c1_27, %c0_28, %c0_29], %59 {strides = array<i32>} : memref<1x4x8x128xf32, #tpu.memory_space<vmem>>, vector<1x1x8x128xf32>,
      %c0_30 = arith.constant 0 : index
      %c2 = arith.constant 2 : index
      %c0_31 = arith.constant 0 : index
      %c0_32 = arith.constant 0 : index
      %60 = vector.load %arg4[%c0_30, %c2, %c0_31, %c0_32] : memref<1x4x8x128xf32, #tpu.memory_space<vmem>>, vector<1x1x8x128xf32>
      %61 = vector.shape_cast %60 : vector<1x1x8x128xf32> to vector<8x128xf32>
      %62 = arith.mulf %36, %42 : vector<8x128xf32>
      %63 = vector.shape_cast %62 : vector<8x128xf32> to vector<1x8x128xf32>
      %cst_33 = arith.constant dense<0.000000e+00> : vector<8x128xf32>
      %64 = vector.multi_reduction <add>, %63, %cst_33 [0] : vector<1x8x128xf32> to vector<8x128xf32>
      %65 = arith.addf %61, %64 : vector<8x128xf32>
      %c0_34 = arith.constant 0 : index
      %c2_35 = arith.constant 2 : index
      %c0_36 = arith.constant 0 : index
      %c0_37 = arith.constant 0 : index
      %66 = vector.load %arg4[%c0_34, %c2_35, %c0_36, %c0_37] : memref<1x4x8x128xf32, #tpu.memory_space<vmem>>, vector<1x1x8x128xf32>
      %67 = vector.shape_cast %66 : vector<1x1x8x128xf32> to vector<8x128xf32>
      %68 = vector.shape_cast %65 : vector<8x128xf32> to vector<1x1x8x128xf32>
      tpu.vector_store %arg4[%c0_34, %c2_35, %c0_36, %c0_37], %68 {strides = array<i32>} : memref<1x4x8x128xf32, #tpu.memory_space<vmem>>, vector<1x1x8x128xf32>,
      %c0_38 = arith.constant 0 : index
      %c3 = arith.constant 3 : index
      %c0_39 = arith.constant 0 : index
      %c0_40 = arith.constant 0 : index
      %69 = vector.load %arg4[%c0_38, %c3, %c0_39, %c0_40] : memref<1x4x8x128xf32, #tpu.memory_space<vmem>>, vector<1x1x8x128xf32>
      %70 = vector.shape_cast %69 : vector<1x1x8x128xf32> to vector<8x128xf32>
      %71 = vector.shape_cast %36 : vector<8x128xf32> to vector<1x8x128xf32>
      %cst_41 = arith.constant dense<0.000000e+00> : vector<8x128xf32>
      %72 = vector.multi_reduction <add>, %71, %cst_41 [0] : vector<1x8x128xf32> to vector<8x128xf32>
      %73 = arith.addf %70, %72 : vector<8x128xf32>
      %c0_42 = arith.constant 0 : index
      %c3_43 = arith.constant 3 : index
      %c0_44 = arith.constant 0 : index
      %c0_45 = arith.constant 0 : index
      %74 = vector.load %arg4[%c0_42, %c3_43, %c0_44, %c0_45] : memref<1x4x8x128xf32, #tpu.memory_space<vmem>>, vector<1x1x8x128xf32>
      %75 = vector.shape_cast %74 : vector<1x1x8x128xf32> to vector<8x128xf32>
      %76 = vector.shape_cast %73 : vector<8x128xf32> to vector<1x1x8x128xf32>
      tpu.vector_store %arg4[%c0_42, %c3_43, %c0_44, %c0_45], %76 {strides = array<i32>} : memref<1x4x8x128xf32, #tpu.memory_space<vmem>>, vector<1x1x8x128xf32>,
    } else {
    }
    return
  }
  func.func @transform_0(%arg0: i32, %arg1: i32) -> (i32, i32) {
    %c1_i32 = arith.constant 1 : i32
    %0 = arith.muli %arg0, %c1_i32 : i32
    %1 = arith.addi %0, %arg1 : i32
    %c0_i32 = arith.constant 0 : i32
    %c0_i32_0 = arith.constant 0 : i32
    return %1, %c0_i32 : i32, i32
  }
  func.func @transform_1(%arg0: i32, %arg1: i32) -> (i32, i32) {
    %c1_i32 = arith.constant 1 : i32
    %0 = arith.muli %arg0, %c1_i32 : i32
    %1 = arith.addi %0, %arg1 : i32
    %c0_i32 = arith.constant 0 : i32
    %c0_i32_0 = arith.constant 0 : i32
    return %1, %c0_i32 : i32, i32
  }
  func.func @transform_2(%arg0: i32, %arg1: i32) -> (i32, i32, i32, i32) {
    %c0_i32 = arith.constant 0 : i32
    %c0_i32_0 = arith.constant 0 : i32
    %c0_i32_1 = arith.constant 0 : i32
    %c0_i32_2 = arith.constant 0 : i32
    return %arg0, %c0_i32, %c0_i32_0, %c0_i32_1 : i32, i32, i32, i32
  }
}

</mosaic_0001>

<llo_original>
// kernel: tpu_custom_call.1
$region0: #{tpu_custom_call.1}
  #allocation0 [shape = 'u32[]', space=smem, size = 0x4, offset = 0x4, fixed_abs, tag = 'smem constant byte address 0x4 - core index']
  #allocation1 [shape = 'u32[144,128]{1,0:T(1,128)}', space=vmem, size = 0x12000, scoped, tag = 'internal scratch']
  %s0 = inlined_call_operand.hbm [shape: f32[16,128], index: 0, kind: input, shape index: {}]
  %s1 = inlined_call_operand.hbm [shape: f32[16,128], index: 1, kind: input, shape index: {}]
  %s2 = inlined_call_operand.hbm [shape: f32[2,4,8,128], index: 2, kind: output, shape index: {}]
  %s3 = sld [smem:[#allocation0]]
  $region61: #{tpu_custom_call.1} parent=0
    _
  %s5 = ssub.s32 1, %s3
  %s6 = scalar_select 0, %s5, %s3
  $region1: #{tpu_custom_call.1} parent=0
    #allocation2 [shape = 'u8[8192]{0}', space=vmem, size = 0x2000, scoped, tag = 'input window, operand 0']
    #allocation3 [shape = 's32[2]{0}', space=sflag, size = 0x8, scoped, tag = 'scoped memory for tpu_custom_call.1']
    #allocation4 [shape = 's32[2]{0}', space=sflag, size = 0x8, scoped, tag = 'scoped memory for tpu_custom_call.1']
    #allocation5 [shape = 'u8[8192]{0}', space=vmem, size = 0x2000, scoped, tag = 'input window, operand 1']
    #allocation6 [shape = 's32[2]{0}', space=sflag, size = 0x8, scoped, tag = 'scoped memory for tpu_custom_call.1']
    #allocation7 [shape = 'u8[32768]{0}', space=vmem, size = 0x8000, scoped, tag = 'output window, operand 0']
    %7 = vsyncpa [#allocation3], 0
    %s8 = scalar_lea.sflag [#allocation3], 1
    %9 = vsyncpa %s8, 0
    %10 = vsyncpa [#allocation6], 0
    %s11 = scalar_lea.sflag [#allocation6], 1
    %12 = vsyncpa %s11, 0
    %13 = vsyncpa [#allocation4], 0
    %s14 = scalar_lea.sflag [#allocation4], 1
    %15 = vsyncpa %s14, 0
    loop: start=0, step=1, limit=4
    $region2: #{tpu_custom_call.1} parent=1 // loop_pre_header
      _
    $region3: #{tpu_custom_call.1} parent=1 // loop_header
      %s17 = sphi 0, %s21
      %p18 = scmp.ge.s32.totalorder %s17, 4
      %s24 = sphi 0, %s36
      %s25 = sphi 0, %s32
      %s26 = sphi 0, %s24
      %s27 = sphi 0, %s25
      %s28 = sphi 0, %s26
      %s29 = sphi 0, %s27
      %s41 = sphi 0, %s43
      %s44 = sphi 0, %s41
      %s45 = sphi 0, %s44
      %s61 = sphi 0, %s45
      %s69 = sphi 0, %s71
      %s72 = sphi 0, %s69
      %s73 = sphi 0, %s72
      %s89 = sphi 0, %s73
      %s95 = sphi 0, %s97
      %s98 = sphi 0, %s95
      %s99 = sphi 0, %s98
      %s115 = sphi 0, %s99
    $region4: #{tpu_custom_call.1} parent=1 // loop_header_branch
      %20 = sbr.rel (%p18) target = $region8
    $region5: #{tpu_custom_call.1} parent=1 // loop_body
      %s22 = ssub.s32 %s17, 1
      %s23 = ssub.s32 %s17, 2
      %s30 = sadd.s32 1, %s25
      %p31 = scmp.ge.s32.totalorder %s30, 1
      %s32 = scalar_select %p31, 0, %s30
      %s33 = sadd.s32 1, %s24
      %s34 = scalar_select %p31, %s33, %s24
      %p35 = scmp.ge.s32.totalorder %s34, 2
      %s36 = scalar_select %p35, 0, %s34
      %s37 = sadd.s32 %s24, %s25
      %s38 = sadd.s32 %s36, %s32
      %s39 = ssub.s32 %s37, %s38
      %p40 = scmp.eq.s32.totalorder %s39, 0
      %s42 = sadd.s32 %s41, 1
      %s43 = scalar_select %p40, %s41, %s42
      %p46 = pneg %p40
      %p47 = scmp.eq.s32.totalorder %s17, 1
      %p48 = por %p46, %p47
      %p49 = scmp.ne.s32.totalorder %s41, %s44
      %p50 = scmp.eq.s32.totalorder %s17, 0
      %p51 = por %p49, %p50
      %p52 = scmp.ne.s32.totalorder %s41, %s44
      %p53 = scmp.eq.s32.totalorder %s22, 1
      %p54 = por %p52, %p53
      %p55 = scmp.ne.s32.totalorder %s44, %s45
      %p56 = scmp.eq.s32.totalorder %s22, 0
      %p57 = por %p55, %p56
      %p58 = scmp.ne.s32.totalorder %s44, %s45
      %p59 = scmp.eq.s32.totalorder %s23, 1
      %p60 = por %p58, %p59
      %p62 = scmp.ne.s32.totalorder %s45, %s61
      %p63 = scmp.eq.s32.totalorder %s23, 0
      %p64 = por %p62, %p63
      %s65 = sadd.s32 %s24, %s25
      %s66 = sadd.s32 %s36, %s32
      %s67 = ssub.s32 %s65, %s66
      %p68 = scmp.eq.s32.totalorder %s67, 0
      %s70 = sadd.s32 %s69, 1
      %s71 = scalar_select %p68, %s69, %s70
      %p74 = pneg %p68
      %p75 = scmp.eq.s32.totalorder %s17, 1
      %p76 = por %p74, %p75
      %p77 = scmp.ne.s32.totalorder %s69, %s72
      %p78 = scmp.eq.s32.totalorder %s17, 0
      %p79 = por %p77, %p78
      %p80 = scmp.ne.s32.totalorder %s69, %s72
      %p81 = scmp.eq.s32.totalorder %s22, 1
      %p82 = por %p80, %p81
      %p83 = scmp.ne.s32.totalorder %s72, %s73
      %p84 = scmp.eq.s32.totalorder %s22, 0
      %p85 = por %p83, %p84
      %p86 = scmp.ne.s32.totalorder %s72, %s73
      %p87 = scmp.eq.s32.totalorder %s23, 1
      %p88 = por %p86, %p87
      %p90 = scmp.ne.s32.totalorder %s73, %s89
      %p91 = scmp.eq.s32.totalorder %s23, 0
      %p92 = por %p90, %p91
      %s93 = ssub.s32 %s24, %s36
      %p94 = scmp.eq.s32.totalorder %s93, 0
      %s96 = sadd.s32 %s95, 1
      %s97 = scalar_select %p94, %s95, %s96
      %p100 = pneg %p94
      %p101 = scmp.eq.s32.totalorder %s17, 1
      %p102 = por %p100, %p101
      %p103 = scmp.ne.s32.totalorder %s95, %s98
      %p104 = scmp.eq.s32.totalorder %s17, 0
      %p105 = por %p103, %p104
      %p106 = scmp.ne.s32.totalorder %s95, %s98
      %p107 = scmp.eq.s32.totalorder %s22, 1
      %p108 = por %p106, %p107
      %p109 = scmp.ne.s32.totalorder %s98, %s99
      %p110 = scmp.eq.s32.totalorder %s22, 0
      %p111 = por %p109, %p110
      %p112 = scmp.ne.s32.totalorder %s98, %s99
      %p113 = scmp.eq.s32.totalorder %s23, 1
      %p114 = por %p112, %p113
      %p116 = scmp.ne.s32.totalorder %s99, %s115
      %p117 = scmp.eq.s32.totalorder %s23, 0
      %p118 = por %p116, %p117
      %p119 = scmp.le.s32.totalorder 1, %s17
      %p120 = scmp.lt.s32.totalorder %s17, 3
      %p121 = pnand %p119, %p120
      %p122 = pneg %p121
      // Predicated region
      $region9: #{tpu_custom_call.1} parent=5 // pred_check
        _
      $region10: #{tpu_custom_call.1} parent=5 // pred_check_branch
        %124 = sbr.rel (%p121) target = $region12
      $region11: #{tpu_custom_call.1} parent=5 // pred_region
        %s125 = ssub.s32 %s17, 1
      $region12: #{tpu_custom_call.1} parent=5 // pred_fallthru
        _
      %p126 = scmp.lt.s32.totalorder %s17, 2
      // Predicated region
      $region13: #{tpu_custom_call.1} parent=5 // pred_check
        %p127 = pneg %p126
      $region14: #{tpu_custom_call.1} parent=5 // pred_check_branch
        %129 = sbr.rel (%p127) target = $region16
      $region15: #{tpu_custom_call.1} parent=5 // pred_region
        // Predicated region
        $region17: #{tpu_custom_call.1} parent=15 // pred_check
          %p130 = pneg %p51
        $region18: #{tpu_custom_call.1} parent=15 // pred_check_branch
          %132 = sbr.rel (%p130) target = $region20
        $region19: #{tpu_custom_call.1} parent=15 // pred_region
          %s133 = sand.u32 %s41, 1
          %s134 = scalar_lea.sflag [#allocation3], %s133
          %s135 = sand.u32 %s41, 1
          %s136 = smul.addr %s135, 8
          %s137 = scalar_lea.vmem [#allocation2], %s136
          %s138 = sadd.s32 %s24, %s25
          %s140 = ssub.s32 128, 128
          %141 = vsyncadd %s134, %s140
          %s142 = smul.addr %s138, 128
          %s143 = scalar_lea.hbm %s0, %s142
          %s145 = sshll.u32 %s137, 4
          %s146 = int_to_ptr.vmem [resolvable:$true] %s145
          %148 = dma.hbm_to_vmem [thread:$0]  %s143, 128, %s146, %s134
        $region20: #{tpu_custom_call.1} parent=15 // pred_fallthru
          _
        // Predicated region
        $region21: #{tpu_custom_call.1} parent=15 // pred_check
          %p149 = pneg %p79
        $region22: #{tpu_custom_call.1} parent=15 // pred_check_branch
          %151 = sbr.rel (%p149) target = $region24
        $region23: #{tpu_custom_call.1} parent=15 // pred_region
          %s152 = sand.u32 %s69, 1
          %s153 = scalar_lea.sflag [#allocation6], %s152
          %s154 = sand.u32 %s69, 1
          %s155 = smul.addr %s154, 8
          %s156 = scalar_lea.vmem [#allocation5], %s155
          %s157 = sadd.s32 %s24, %s25
          %s159 = ssub.s32 128, 128
          %160 = vsyncadd %s153, %s159
          %s161 = smul.addr %s157, 128
          %s162 = scalar_lea.hbm %s1, %s161
          %s164 = sshll.u32 %s156, 4
          %s165 = int_to_ptr.vmem [resolvable:$true] %s164
          %167 = dma.hbm_to_vmem [thread:$0]  %s162, 128, %s165, %s153
        $region24: #{tpu_custom_call.1} parent=15 // pred_fallthru
          _
      $region16: #{tpu_custom_call.1} parent=5 // pred_fallthru
        _
      %p168 = scmp.le.s32.totalorder 1, %s17
      %p169 = scmp.lt.s32.totalorder %s17, 3
      %p170 = pnand %p168, %p169
      %p171 = pneg %p170
      // Predicated region
      $region25: #{tpu_custom_call.1} parent=5 // pred_check
        _
      $region26: #{tpu_custom_call.1} parent=5 // pred_check_branch
        %173 = sbr.rel (%p170) target = $region28
      $region27: #{tpu_custom_call.1} parent=5 // pred_region
        %s174 = ssub.s32 %s17, 1
        %s175 = sand.u32 %s44, 1
        %s176 = scalar_lea.sflag [#allocation3], %s175
        %s177 = sand.u32 %s44, 1
        %s178 = smul.addr %s177, 8
        %s179 = scalar_lea.vmem [#allocation2], %s178
        // Predicated region
        $region29: #{tpu_custom_call.1} parent=27 // pred_check
          %p180 = pneg %p57
        $region30: #{tpu_custom_call.1} parent=27 // pred_check_branch
          %182 = sbr.rel (%p180) target = $region32
        $region31: #{tpu_custom_call.1} parent=27 // pred_region
          %183 = dma.done %s176, 128
        $region32: #{tpu_custom_call.1} parent=27 // pred_fallthru
          _
        %s184 = sand.u32 %s72, 1
        %s185 = scalar_lea.sflag [#allocation6], %s184
        %s186 = sand.u32 %s72, 1
        %s187 = smul.addr %s186, 8
        %s188 = scalar_lea.vmem [#allocation5], %s187
        // Predicated region
        $region33: #{tpu_custom_call.1} parent=27 // pred_check
          %p189 = pneg %p85
        $region34: #{tpu_custom_call.1} parent=27 // pred_check_branch
          %191 = sbr.rel (%p189) target = $region36
        $region35: #{tpu_custom_call.1} parent=27 // pred_region
          %192 = dma.done %s185, 128
        $region36: #{tpu_custom_call.1} parent=27 // pred_fallthru
          _
        %s193 = sand.u32 %s44, 1
        %s194 = scalar_lea.sflag [#allocation3], %s193
        %s195 = sand.u32 %s44, 1
        %s196 = smul.addr %s195, 8
        %s197 = scalar_lea.vmem [#allocation2], %s196
        %p198 = pneg %p57
        %p199 = pneg %p54
        %s200 = sand.u32 %s72, 1
        %s201 = scalar_lea.sflag [#allocation6], %s200
        %s202 = sand.u32 %s72, 1
        %s203 = smul.addr %s202, 8
        %s204 = scalar_lea.vmem [#allocation5], %s203
        %p205 = pneg %p85
        %p206 = pneg %p82
        %p207 = pneg %p111
        %p208 = pneg %p108
        %s209 = sand.u32 %s98, 1
        %s210 = scalar_lea.sflag [#allocation4], %s209
        %s211 = sand.u32 %s98, 1
        %s212 = smul.addr %s211, 32
        %s213 = scalar_lea.vmem [#allocation7], %s212
        %s214 = sadd.s32 %s26, %s27
        %s215 = sadd.s32 %s26, %s27
        %p216 = scmp.eq.s32.totalorder %s27, 0
        // Predicated region
        $region37: #{tpu_custom_call.1} parent=27 // pred_check
          %p217 = pneg %p216
        $region38: #{tpu_custom_call.1} parent=27 // pred_check_branch
          %219 = sbr.rel (%p217) target = $region40
        $region39: #{tpu_custom_call.1} parent=27 // pred_region
          %220 = vst [vmem:[%s213] sm:$0xff] 0.0
          %221 = vst [vmem:[%s213 + $0x8] sm:$0xff] 0.0
          %222 = vst [vmem:[%s213 + $0x10] sm:$0xff] 0.0
          %223 = vst [vmem:[%s213 + $0x18] sm:$0xff] 0.0
        $region40: #{tpu_custom_call.1} parent=27 // pred_fallthru
          _
        %v224 = vld [vmem:[%s179] sm:$0xff]
        %v225 = vld [vmem:[%s188] sm:$0xff]
        %s226 = sadd.s32 %s26, %s27
        %s227 = smul.u32 %s226, 1024
        %s228 = sadd.s32 %s227, 1024
        %p229 = scmp.le.s32.totalorder %s228, 2048
        // Predicated region
        $region41: #{tpu_custom_call.1} parent=27 // pred_check
          %p230 = pneg %p229
        $region42: #{tpu_custom_call.1} parent=27 // pred_check_branch
          %232 = sbr.rel (%p230) target = $region44
        $region43: #{tpu_custom_call.1} parent=27 // pred_region
          %v233 = vsub.f32 %v224, %v225
          %v234 = vand.u32 2147483647, %v233
          %v235 = vadd.f32 %v234, 0.4
          %v236 = vround.ne.pseudo %v235
          %v237 = vmul.f32 %v236, %v224
          %v238 = vsub.f32 %v236, %v237
          %v239 = vadd.f32 %v225, 1e-06
          %v240 = vlog2.pop %v239
          %v241 = vmul.f32 %v240, 0.6931472
          %v242 = vsub.f32 1.000001, %v225
          %v243 = vlog2.pop %v242
          %v244 = vmul.f32 %v243, 0.6931472
          %v245 = vld [vmem:[%s213] sm:$0xff]
          %v246 = vmul.f32 %v237, %v241
          %v247 = vadd.f32 %v246, 0.0
          %v248 = vadd.f32 %v245, %v247
          %249 = vst [vmem:[%s213] sm:$0xff] %v248
          %s250 = scalar_lea.vmem %s213, 8 [#allocation7]
          %v251 = vld [vmem:[%s250] sm:$0xff]
          %v252 = vadd.f32 %v237, 0.0
          %v253 = vadd.f32 %v251, %v252
          %254 = vst [vmem:[%s250] sm:$0xff] %v253
          %s255 = scalar_lea.vmem %s213, 16 [#allocation7]
          %v256 = vld [vmem:[%s255] sm:$0xff]
          %v257 = vmul.f32 %v238, %v244
          %v258 = vadd.f32 %v257, 0.0
          %v259 = vadd.f32 %v256, %v258
          %260 = vst [vmem:[%s255] sm:$0xff] %v259
          %s261 = scalar_lea.vmem %s213, 24 [#allocation7]
          %v262 = vld [vmem:[%s261] sm:$0xff]
          %v263 = vadd.f32 %v238, 0.0
          %v264 = vadd.f32 %v262, %v263
          %265 = vst [vmem:[%s261] sm:$0xff] %v264
        $region44: #{tpu_custom_call.1} parent=27 // pred_fallthru
          _
        %p266 = scmp.gt.s32.totalorder %s228, 2048
        // Predicated region
        $region45: #{tpu_custom_call.1} parent=27 // pred_check
          %p267 = pneg %p266
        $region46: #{tpu_custom_call.1} parent=27 // pred_check_branch
          %269 = sbr.rel (%p267) target = $region48
        $region47: #{tpu_custom_call.1} parent=27 // pred_region
          %v270 = vlaneseq
          %v271 = vshrl.u32 %v270, 7
          %v272 = vlaneseq
          %v273 = vand.u32 %v272, 127
          %s274 = ssub.s32 2048, %s227
          %v275 = vmul.u32 %v271, 128
          %v276 = vadd.s32 %v275, %v273
          %v277 = vstv %s274
          %vm278 = vcmp.lt.s32.totalorder %v276, %v277
          %v279 = vsel %vm278, %v224, 0.0
          %v280 = vsel %vm278, %v225, 0.5
          %v281 = vsel %vm278, 1, 0
          %v282 = vcvt.s32.f32 %v281
          %v283 = vsub.f32 %v279, %v280
          %v284 = vand.u32 2147483647, %v283
          %v285 = vadd.f32 %v284, 0.4
          %v286 = vround.ne.pseudo %v285
          %v287 = vmul.f32 %v286, %v282
          %v288 = vmul.f32 %v287, %v279
          %v289 = vsub.f32 %v287, %v288
          %v290 = vadd.f32 %v280, 1e-06
          %v291 = vlog2.pop %v290
          %v292 = vmul.f32 %v291, 0.6931472
          %v293 = vsub.f32 1.000001, %v280
          %v294 = vlog2.pop %v293
          %v295 = vmul.f32 %v294, 0.6931472
          %v296 = vld [vmem:[%s213] sm:$0xff]
          %v297 = vmul.f32 %v288, %v292
          %v298 = vadd.f32 %v297, 0.0
          %v299 = vadd.f32 %v296, %v298
          %300 = vst [vmem:[%s213] sm:$0xff] %v299
          %s301 = scalar_lea.vmem %s213, 8 [#allocation7]
          %v302 = vld [vmem:[%s301] sm:$0xff]
          %v303 = vadd.f32 %v288, 0.0
          %v304 = vadd.f32 %v302, %v303
          %305 = vst [vmem:[%s301] sm:$0xff] %v304
          %s306 = scalar_lea.vmem %s213, 16 [#allocation7]
          %v307 = vld [vmem:[%s306] sm:$0xff]
          %v308 = vmul.f32 %v289, %v295
          %v309 = vadd.f32 %v308, 0.0
          %v310 = vadd.f32 %v307, %v309
          %311 = vst [vmem:[%s306] sm:$0xff] %v310
          %s312 = scalar_lea.vmem %s213, 24 [#allocation7]
          %v313 = vld [vmem:[%s312] sm:$0xff]
          %v314 = vadd.f32 %v289, 0.0
          %v315 = vadd.f32 %v313, %v314
          %316 = vst [vmem:[%s312] sm:$0xff] %v315
        $region48: #{tpu_custom_call.1} parent=27 // pred_fallthru
          _
        %s317 = sand.u32 %s98, 1
        %s318 = scalar_lea.sflag [#allocation4], %s317
        %s319 = sand.u32 %s98, 1
        %s320 = smul.addr %s319, 32
        %s321 = scalar_lea.vmem [#allocation7], %s320
        // Predicated region
        $region49: #{tpu_custom_call.1} parent=27 // pred_check
          %p322 = pneg %p108
        $region50: #{tpu_custom_call.1} parent=27 // pred_check_branch
          %324 = sbr.rel (%p322) target = $region52
        $region51: #{tpu_custom_call.1} parent=27 // pred_region
          %s326 = ssub.s32 512, 512
          %327 = vsyncadd %s318, %s326
          %s328 = smul.addr %s26, 4
          %s329 = smul.addr %s328, 128
          %s330 = scalar_lea.hbm %s2, %s329
          %s331 = sshll.u32 %s321, 4
          %s332 = int_to_ptr.vmem [resolvable:$true] %s331
          %337 = dma.vmem_to_hbm [thread:$0]  %s332, 512, %s330, %s318, 128, 128, 8
        $region52: #{tpu_custom_call.1} parent=27 // pred_fallthru
          _
      $region28: #{tpu_custom_call.1} parent=5 // pred_fallthru
        _
      %p338 = scmp.le.s32.totalorder 2, %s17
      // Predicated region
      $region53: #{tpu_custom_call.1} parent=5 // pred_check
        %p339 = pneg %p338
      $region54: #{tpu_custom_call.1} parent=5 // pred_check_branch
        %341 = sbr.rel (%p339) target = $region56
      $region55: #{tpu_custom_call.1} parent=5 // pred_region
        %s342 = ssub.s32 %s17, 2
        // Predicated region
        $region57: #{tpu_custom_call.1} parent=55 // pred_check
          %p343 = pneg %p114
        $region58: #{tpu_custom_call.1} parent=55 // pred_check_branch
          %345 = sbr.rel (%p343) target = $region60
        $region59: #{tpu_custom_call.1} parent=55 // pred_region
          %s346 = sand.u32 %s99, 1
          %s347 = scalar_lea.sflag [#allocation4], %s346
          %s348 = sand.u32 %s99, 1
          %s349 = smul.addr %s348, 32
          %s350 = scalar_lea.vmem [#allocation7], %s349
          %351 = dma.done %s347, 512
        $region60: #{tpu_custom_call.1} parent=55 // pred_fallthru
          _
      $region56: #{tpu_custom_call.1} parent=5 // pred_fallthru
        _
    $region6: #{tpu_custom_call.1} parent=1 // loop_footer
      %s21 = sadd.s32 1, %s17
    $region7: #{tpu_custom_call.1} parent=1 // loop_footer_branch
      %16 = sbr.rel target = $region3
    $region8: #{tpu_custom_call.1} parent=1 // loop_exit
      _
    %352 = vsyncpa [#allocation3], 1
    %s353 = scalar_lea.sflag [#allocation3], 1
    %354 = vsyncpa %s353, 1
    %355 = vsyncpa [#allocation6], 1
    %s356 = scalar_lea.sflag [#allocation6], 1
    %357 = vsyncpa %s356, 1
    %358 = vsyncpa [#allocation4], 1
    %s359 = scalar_lea.sflag [#allocation4], 1
    %360 = vsyncpa %s359, 1

</llo_original>
